<compile_context>
chip_gen: v7x
topology: tpu7x:2x2x1
jax: 0.10.0
libtpu: 0.0.40
codegen_flags: <defaults>
</compile_context>

<pallas_src>
import functools

import jax
import jax.numpy as jnp
from jax.experimental import pallas as pl
from jax.experimental.pallas import tpu as pltpu


def _round_up(x, m):
    return (x + m - 1) // m * m


def _matmul_kernel(a_ref, b_ref, o_ref, acc_ref):
    """Tiled matmul body. grid = (M/tm, N/tn, K/tk); K (last axis) is the
    sequential reduction axis, accumulated in a float32 VMEM scratch."""

    @pl.when(pl.program_id(2) == 0)
    def _():
        acc_ref[...] = jnp.zeros_like(acc_ref)

    acc_ref[...] += jnp.dot(
        a_ref[...], b_ref[...], preferred_element_type=jnp.float32
    )

    @pl.when(pl.program_id(2) == pl.num_programs(2) - 1)
    def _():
        o_ref[...] = acc_ref[...].astype(o_ref.dtype)


def _pallas_matmul(a, b, *, tm=256, tn=256, tk=256, out_dtype=None):
    """A @ B on the MXU.  Pads every dimension to TPU-friendly (8,128)-aligned
    tile multiples (so all HBM stores are lane-dense) and slices the result
    back to (M, N)."""
    M, K = a.shape
    Kb, N = b.shape
    assert K == Kb, "contraction dimension mismatch"
    out_dtype = out_dtype or a.dtype

    # Clamp the tile sizes to the (padded) problem while keeping alignment:
    # tm multiple of 8, tn/tk multiples of 128.
    tm = min(tm, _round_up(M, 8))
    tn = min(tn, _round_up(N, 128))
    tk = min(tk, _round_up(K, 128))

    Mp = _round_up(M, tm)
    Kp = _round_up(K, tk)
    Np = _round_up(N, tn)

    if (Mp, Kp) != (M, K):
        a = jnp.pad(a, ((0, Mp - M), (0, Kp - K)))
    if (Kp, Np) != (K, N):
        b = jnp.pad(b, ((0, Kp - K), (0, Np - N)))

    grid = (Mp // tm, Np // tn, Kp // tk)

    out = pl.pallas_call(
        _matmul_kernel,
        out_shape=jax.ShapeDtypeStruct((Mp, Np), out_dtype),
        grid=grid,
        in_specs=[
            pl.BlockSpec((tm, tk), lambda i, j, k: (i, k)),
            pl.BlockSpec((tk, tn), lambda i, j, k: (k, j)),
        ],
        out_specs=pl.BlockSpec((tm, tn), lambda i, j, k: (i, j)),
        scratch_shapes=[pltpu.VMEM((tm, tn), jnp.float32)],
        compiler_params=pltpu.CompilerParams(
            dimension_semantics=("parallel", "parallel", "arbitrary"),
            vmem_limit_bytes=32 * 1024 * 1024,
        ),
    )(a, b)

    return out[:M, :N]


def bilinear2d(input1, input2, weight, *, tm=256, tn=256, tk=256):
    """out = input1 @ weight @ input2 (the Bilinear2D forward, 2-D branch)."""
    M, K1 = input1.shape
    K1w, K2 = weight.shape
    K2b, N = input2.shape
    assert K1 == K1w and K2 == K2b, "shape mismatch"

    # Lane-dense (padded) sizes drive the association cost model.
    K2p = _round_up(K2, 128)
    Np = _round_up(N, 128)

    # Per output row of A (MXU MACs):
    #   left  : (A @ U) @ B  ->  K1*K2p + K2p*Np
    #   right :  A @ (U @ B) ->  K1*Np      (+ one-time K1*K2p*Np fold)
    fold = (K1 * K2p + K2p * Np) >= (K1 * Np)

    mm = functools.partial(_pallas_matmul, tm=tm, tn=tn, tk=tk)
    if fold:
        ub = mm(weight, input2)        # (K1, N), one-time fold U @ B
        out = mm(input1, ub)           # (M, N) hot path: A_tile @ UB
    else:
        t = mm(input1, weight)         # (M, K2)
        out = mm(t, input2)            # (M, N)
    return out


if __name__ == "__main__":
    key = jax.random.PRNGKey(0)

    def run_case(case_id, M, in1_features, in2_features, N):
        k_w, k_a, k_b = jax.random.split(jax.random.fold_in(key, case_id), 3)
        # Deterministic normal(0,1) init, matching torch.nn.init.normal_.
        weight = jax.random.normal(k_w, (in1_features, in2_features), jnp.float32)
        input1 = jax.random.normal(k_a, (M, in1_features), jnp.float32)
        input2 = jax.random.normal(k_b, (in2_features, N), jnp.float32)

        out = jax.block_until_ready(bilinear2d(input1, input2, weight))

        ref = jnp.dot(
            jnp.dot(input1, weight, precision=jax.lax.Precision.HIGHEST),
            input2,
            precision=jax.lax.Precision.HIGHEST,
        )
        assert out.shape == (M, N)
        assert jnp.allclose(out, ref, atol=1e-3, rtol=1e-3), (
            f"case {case_id}: mismatch vs reference"
        )

    # Case 0: module-default small shapes (exercises the folded U@B path).
    run_case(0, M=16, in1_features=32, in2_features=32, N=16)
    # Case 1: shapes where left-association wins; M=37 exercises row padding.
    run_case(1, M=37, in1_features=384, in2_features=64, N=384)

    print("KERNEL_OK")
</pallas_src>

<mosaic_0001>
module attributes {stable_mosaic.version = 11 : i64} {
  func.func @_matmul_kernel(%arg0: i32, %arg1: i32, %arg2: i32, %arg3: memref<32x128xf32, #tpu.memory_space<vmem>>, %arg4: memref<128x128xf32, #tpu.memory_space<vmem>>, %arg5: memref<32x128xf32, #tpu.memory_space<vmem>>, %arg6: memref<32x128xf32, #tpu.memory_space<vmem>>) attributes {dimension_semantics = [#tpu.dimension_semantics<parallel>, #tpu.dimension_semantics<parallel>, #tpu.dimension_semantics<arbitrary>], iteration_bounds = array<i64: 1, 1, 1>, scalar_prefetch = 0 : i64, scratch_operands = 1 : i64, tpu.core_type = #tpu.core_type<tc>, window_params = [{transform_indices = @transform_0, window_bounds = array<i64: 32, 128>}, {transform_indices = @transform_1, window_bounds = array<i64: 128, 128>}, {transform_indices = @transform_2, window_bounds = array<i64: 32, 128>}]} {
    %c0_i32 = arith.constant 0 : i32
    %0 = arith.cmpi eq, %arg2, %c0_i32 : i32
    %1 = arith.extui %0 : i1 to i32
    %c0_i32_0 = arith.constant 0 : i32
    %2 = arith.cmpi ne, %1, %c0_i32_0 : i32
    scf.if %2 {
      %cst_10 = arith.constant 0.000000e+00 : f32
      %12 = vector.broadcast %cst_10 : f32 to vector<32x128xf32>
      %c0_11 = arith.constant 0 : index
      %c0_12 = arith.constant 0 : index
      %13 = vector.load %arg6[%c0_11, %c0_12] : memref<32x128xf32, #tpu.memory_space<vmem>>, vector<32x128xf32>
      tpu.vector_store %arg6[%c0_11, %c0_12], %12 {strides = array<i32>} : memref<32x128xf32, #tpu.memory_space<vmem>>, vector<32x128xf32>,
    } else {
    }
    %c0 = arith.constant 0 : index
    %c0_1 = arith.constant 0 : index
    %3 = vector.load %arg6[%c0, %c0_1] : memref<32x128xf32, #tpu.memory_space<vmem>>, vector<32x128xf32>
    %c0_2 = arith.constant 0 : index
    %c0_3 = arith.constant 0 : index
    %4 = vector.load %arg3[%c0_2, %c0_3] : memref<32x128xf32, #tpu.memory_space<vmem>>, vector<32x128xf32>
    %c0_4 = arith.constant 0 : index
    %c0_5 = arith.constant 0 : index
    %5 = vector.load %arg4[%c0_4, %c0_5] : memref<128x128xf32, #tpu.memory_space<vmem>>, vector<128x128xf32>
    %cst = arith.constant dense<0.000000e+00> : vector<32x128xf32>
    %6 = tpu.matmul %4, %5, %cst {dimension_numbers = #tpu.dot_dimension_numbers<[1], [0], [0], [1], [0, 0, 1, 1], [], []>} : vector<32x128xf32>, vector<128x128xf32>, vector<32x128xf32> -> vector<32x128xf32>
    %7 = arith.addf %3, %6 : vector<32x128xf32>
    %c0_6 = arith.constant 0 : index
    %c0_7 = arith.constant 0 : index
    %8 = vector.load %arg6[%c0_6, %c0_7] : memref<32x128xf32, #tpu.memory_space<vmem>>, vector<32x128xf32>
    tpu.vector_store %arg6[%c0_6, %c0_7], %7 {strides = array<i32>} : memref<32x128xf32, #tpu.memory_space<vmem>>, vector<32x128xf32>,
    %c0_i32_8 = arith.constant 0 : i32
    %9 = arith.cmpi eq, %arg2, %c0_i32_8 : i32
    %10 = arith.extui %9 : i1 to i32
    %c0_i32_9 = arith.constant 0 : i32
    %11 = arith.cmpi ne, %10, %c0_i32_9 : i32
    scf.if %11 {
      %c0_10 = arith.constant 0 : index
      %c0_11 = arith.constant 0 : index
      %12 = vector.load %arg6[%c0_10, %c0_11] : memref<32x128xf32, #tpu.memory_space<vmem>>, vector<32x128xf32>
      %c0_12 = arith.constant 0 : index
      %c0_13 = arith.constant 0 : index
      %13 = vector.load %arg5[%c0_12, %c0_13] : memref<32x128xf32, #tpu.memory_space<vmem>>, vector<32x128xf32>
      tpu.vector_store %arg5[%c0_12, %c0_13], %12 {strides = array<i32>} : memref<32x128xf32, #tpu.memory_space<vmem>>, vector<32x128xf32>,
    } else {
    }
    return
  }
  func.func @transform_0(%arg0: i32, %arg1: i32, %arg2: i32) -> (i32, i32) {
    %c0_i32 = arith.constant 0 : i32
    return %arg0, %arg2 : i32, i32
  }
  func.func @transform_1(%arg0: i32, %arg1: i32, %arg2: i32) -> (i32, i32) {
    %c0_i32 = arith.constant 0 : i32
    return %arg2, %arg1 : i32, i32
  }
  func.func @transform_2(%arg0: i32, %arg1: i32, %arg2: i32) -> (i32, i32) {
    %c0_i32 = arith.constant 0 : i32
    return %arg0, %arg1 : i32, i32
  }
}

</mosaic_0001>

<llo_original>
// kernel: tpu_custom_call.1
$region0: #{tpu_custom_call.1}
  #allocation0 [shape = 'u32[]', space=smem, size = 0x4, offset = 0x4, fixed_abs, tag = 'smem constant byte address 0x4 - core index']
  #allocation1 [shape = 'u32[144,128]{1,0:T(1,128)}', space=vmem, size = 0x12000, scoped, tag = 'internal scratch']
  #allocation2 [shape = 'f32[32,128]{1,0:T(8,128)}', space=vmem, size = 0x4000, scoped, tag = 'scratch operand']
  %s0 = inlined_call_operand.hbm [shape: f32[32,128], index: 0, kind: input, shape index: {}]
  %s1 = inlined_call_operand.hbm [shape: f32[128,128], index: 1, kind: input, shape index: {}]
  %s2 = inlined_call_operand.hbm [shape: f32[32,128], index: 2, kind: output, shape index: {}]
  %s3 = sld [smem:[#allocation0]]
  $region34: #{tpu_custom_call.1} parent=0
    _
  %s5 = ssub.s32 1, %s3
  %s6 = scalar_select 0, %s5, %s3
  $region1: #{tpu_custom_call.1} parent=0
    #allocation3 [shape = 'u8[16384]{0}', space=vmem, size = 0x4000, scoped, tag = 'input window, operand 0, single buffered']
    #allocation4 [shape = 's32[1]{0}', space=sflag, size = 0x4, scoped, tag = 'scoped memory for tpu_custom_call.1']
    #allocation5 [shape = 's32[1]{0}', space=sflag, size = 0x4, scoped, tag = 'scoped memory for tpu_custom_call.1']
    #allocation6 [shape = 'u8[65536]{0}', space=vmem, size = 0x10000, scoped, tag = 'input window, operand 1, single buffered']
    #allocation7 [shape = 's32[1]{0}', space=sflag, size = 0x4, scoped, tag = 'scoped memory for tpu_custom_call.1']
    #allocation8 [shape = 'u8[16384]{0}', space=vmem, size = 0x4000, scoped, tag = 'output window, operand 0, single buffered']
    %7 = vsyncpa [#allocation4], 0
    %8 = vsyncpa [#allocation7], 0
    %9 = vsyncpa [#allocation5], 0
    // Predicated region
    $region2: #{tpu_custom_call.1} parent=1 // pred_check
      _
    $region3: #{tpu_custom_call.1} parent=1 // pred_check_branch
      %11 = sbr.rel (0) target = $region5
    $region4: #{tpu_custom_call.1} parent=1 // pred_region
      %s13 = ssub.s32 512, 512
      %14 = vsyncadd [#allocation4], %s13
      %s15 = sshll.u32 [#allocation3], 4
      %s16 = int_to_ptr.vmem [resolvable:$true] %s15
      %21 = dma.hbm_to_vmem [thread:$0]  %s0, 512, %s16, [#allocation4], 128, 128, 8
    $region5: #{tpu_custom_call.1} parent=1 // pred_fallthru
      _
    // Predicated region
    $region6: #{tpu_custom_call.1} parent=1 // pred_check
      _
    $region7: #{tpu_custom_call.1} parent=1 // pred_check_branch
      %23 = sbr.rel (0) target = $region9
    $region8: #{tpu_custom_call.1} parent=1 // pred_region
      %s25 = ssub.s32 2048, 2048
      %26 = vsyncadd [#allocation7], %s25
      %s27 = sshll.u32 [#allocation6], 4
      %s28 = int_to_ptr.vmem [resolvable:$true] %s27
      %33 = dma.hbm_to_vmem [thread:$0]  %s1, 2048, %s28, [#allocation7], 128, 128, 8
    $region9: #{tpu_custom_call.1} parent=1 // pred_fallthru
      _
    // Predicated region
    $region10: #{tpu_custom_call.1} parent=1 // pred_check
      _
    $region11: #{tpu_custom_call.1} parent=1 // pred_check_branch
      %35 = sbr.rel (0) target = $region13
    $region12: #{tpu_custom_call.1} parent=1 // pred_region
      %36 = dma.done [#allocation4], 512
    $region13: #{tpu_custom_call.1} parent=1 // pred_fallthru
      _
    // Predicated region
    $region14: #{tpu_custom_call.1} parent=1 // pred_check
      _
    $region15: #{tpu_custom_call.1} parent=1 // pred_check_branch
      %38 = sbr.rel (0) target = $region17
    $region16: #{tpu_custom_call.1} parent=1 // pred_region
      %39 = dma.done [#allocation7], 2048
    $region17: #{tpu_custom_call.1} parent=1 // pred_fallthru
      _
    %p40 = scmp.eq.s32.totalorder 0, 0
    // Predicated region
    $region18: #{tpu_custom_call.1} parent=1 // pred_check
      %p41 = pneg %p40
    $region19: #{tpu_custom_call.1} parent=1 // pred_check_branch
      %43 = sbr.rel (%p41) target = $region21
    $region20: #{tpu_custom_call.1} parent=1 // pred_region
      %44 = vst [vmem:[#allocation2] sm:$0xff] 0.0
      %45 = vst [vmem:[#allocation2 + $0x8] sm:$0xff] 0.0
      %46 = vst [vmem:[#allocation2 + $0x10] sm:$0xff] 0.0
      %47 = vst [vmem:[#allocation2 + $0x18] sm:$0xff] 0.0
    $region21: #{tpu_custom_call.1} parent=1 // pred_fallthru
      _
    %v48 = vld [vmem:[#allocation2] sm:$0xff]
    %v49 = vld [vmem:[#allocation2 + $0x8] sm:$0xff]
    %v50 = vld [vmem:[#allocation2 + $0x10] sm:$0xff]
    %v51 = vld [vmem:[#allocation2 + $0x18] sm:$0xff]
    %v52 = vld [vmem:[#allocation3] sm:$0xff]
    %v53 = vld [vmem:[#allocation3 + $0x8] sm:$0xff]
    %v54 = vld [vmem:[#allocation3 + $0x10] sm:$0xff]
    %v55 = vld [vmem:[#allocation3 + $0x18] sm:$0xff]
    %v56 = vld [vmem:[#allocation6] sm:$0xff]
    %v57 = vld [vmem:[#allocation6 + $0x8] sm:$0xff]
    %v58 = vld [vmem:[#allocation6 + $0x10] sm:$0xff]
    %v59 = vld [vmem:[#allocation6 + $0x18] sm:$0xff]
    %v60 = vld [vmem:[#allocation6 + $0x20] sm:$0xff]
    %v61 = vld [vmem:[#allocation6 + $0x28] sm:$0xff]
    %v62 = vld [vmem:[#allocation6 + $0x30] sm:$0xff]
    %v63 = vld [vmem:[#allocation6 + $0x38] sm:$0xff]
    %v64 = vld [vmem:[#allocation6 + $0x40] sm:$0xff]
    %v65 = vld [vmem:[#allocation6 + $0x48] sm:$0xff]
    %v66 = vld [vmem:[#allocation6 + $0x50] sm:$0xff]
    %v67 = vld [vmem:[#allocation6 + $0x58] sm:$0xff]
    %v68 = vld [vmem:[#allocation6 + $0x60] sm:$0xff]
    %v69 = vld [vmem:[#allocation6 + $0x68] sm:$0xff]
    %v70 = vld [vmem:[#allocation6 + $0x70] sm:$0xff]
    %v71 = vld [vmem:[#allocation6 + $0x78] sm:$0xff]
    %72 = vmatprep.subr.mxu0 0.0
    %73 = vmatpush1.msra.mxu0 %v56
    %74 = vmatprep.subr.mxu0 0.0
    %75 = vmatpush1.msra.mxu0 %v57
    %76 = vmatprep.subr.mxu0 0.0
    %77 = vmatpush1.msra.mxu0 %v58
    %78 = vmatprep.subr.mxu0 0.0
    %79 = vmatpush1.msra.mxu0 %v59
    %80 = vmatprep.subr.mxu0 0.0
    %81 = vmatpush1.msra.mxu0 %v60
    %82 = vmatprep.subr.mxu0 0.0
    %83 = vmatpush1.msra.mxu0 %v61
    %84 = vmatprep.subr.mxu0 0.0
    %85 = vmatpush1.msra.mxu0 %v62
    %86 = vmatprep.subr.mxu0 0.0
    %87 = vmatpush1.msra.mxu0 %v63
    %88 = vmatprep.subr.mxu0 0.0
    %89 = vmatpush1.msra.mxu0 %v64
    %90 = vmatprep.subr.mxu0 0.0
    %91 = vmatpush1.msra.mxu0 %v65
    %92 = vmatprep.subr.mxu0 0.0
    %93 = vmatpush1.msra.mxu0 %v66
    %94 = vmatprep.subr.mxu0 0.0
    %95 = vmatpush1.msra.mxu0 %v67
    %96 = vmatprep.subr.mxu0 0.0
    %97 = vmatpush1.msra.mxu0 %v68
    %98 = vmatprep.subr.mxu0 0.0
    %99 = vmatpush1.msra.mxu0 %v69
    %100 = vmatprep.subr.mxu0 0.0
    %101 = vmatpush1.msra.mxu0 %v70
    %102 = vmatprep.subr.mxu0 0.0
    %103 = vmatpush1.msra.mxu0 %v71
    %104 = vmatprep.subr.mxu0 0.0
    %105 = vmatpush1.msra.mxu0 0.0
    %106 = vmatprep.subr.mxu0 0.0
    %107 = vmatpush1.msra.mxu0 0.0
    %108 = vmatprep.subr.mxu0 0.0
    %109 = vmatpush1.msra.mxu0 0.0
    %110 = vmatprep.subr.mxu0 0.0
    %111 = vmatpush1.msra.mxu0 0.0
    %112 = vmatprep.subr.mxu0 0.0
    %113 = vmatpush1.msra.mxu0 0.0
    %114 = vmatprep.subr.mxu0 0.0
    %115 = vmatpush1.msra.mxu0 0.0
    %116 = vmatprep.subr.mxu0 0.0
    %117 = vmatpush1.msra.mxu0 0.0
    %118 = vmatprep.subr.mxu0 0.0
    %119 = vmatpush1.msra.mxu0 0.0
    %120 = vmatprep.subr.mxu0 0.0
    %121 = vmatpush1.msra.mxu0 0.0
    %122 = vmatprep.subr.mxu0 0.0
    %123 = vmatpush1.msra.mxu0 0.0
    %124 = vmatprep.subr.mxu0 0.0
    %125 = vmatpush1.msra.mxu0 0.0
    %126 = vmatprep.subr.mxu0 0.0
    %127 = vmatpush1.msra.mxu0 0.0
    %128 = vmatprep.subr.mxu0 0.0
    %129 = vmatpush1.msra.mxu0 0.0
    %130 = vmatprep.subr.mxu0 0.0
    %131 = vmatpush1.msra.mxu0 0.0
    %132 = vmatprep.subr.mxu0 0.0
    %133 = vmatpush1.msra.mxu0 0.0
    %134 = vmatprep.subr.mxu0 0.0
    %135 = vmatpush1.msra.mxu0 0.0
    %136 = vmatprep.mubr.f32.mxu0 0.0
    %137 = vmatmul.mubr.f32.gmra.mrb[0].mxu0 %v52
    %v138 = vpop.f32.mrb[0].mxu0
    %v139 = vadd.f32 0.0, %v138
    %v140 = vpop.f32.mrb[0].mxu0
    %141 = vmatprep.mubr.f32.mxu0 0.0
    %142 = vmatmul.mubr.f32.gmra.mrb[0].mxu0 %v53
    %v143 = vpop.f32.mrb[0].mxu0
    %v144 = vadd.f32 0.0, %v143
    %v145 = vpop.f32.mrb[0].mxu0
    %146 = vmatprep.mubr.f32.mxu0 0.0
    %147 = vmatmul.mubr.f32.gmra.mrb[0].mxu0 %v54
    %v148 = vpop.f32.mrb[0].mxu0
    %v149 = vadd.f32 0.0, %v148
    %v150 = vpop.f32.mrb[0].mxu0
    %151 = vmatprep.mubr.f32.mxu0 0.0
    %152 = vmatmul.mubr.f32.gmra.mrb[0].mxu0 %v55
    %v153 = vpop.f32.mrb[0].mxu0
    %v154 = vadd.f32 0.0, %v153
    %v155 = vpop.f32.mrb[0].mxu0
    %156 = vdwg.mxu0
    %v157 = vadd.f32 %v48, %v139
    %v158 = vadd.f32 %v49, %v144
    %v159 = vadd.f32 %v50, %v149
    %v160 = vadd.f32 %v51, %v154
    %161 = vst [vmem:[#allocation2] sm:$0xff] %v157
    %162 = vst [vmem:[#allocation2 + $0x8] sm:$0xff] %v158
    %163 = vst [vmem:[#allocation2 + $0x10] sm:$0xff] %v159
    %164 = vst [vmem:[#allocation2 + $0x18] sm:$0xff] %v160
    // Predicated region
    $region22: #{tpu_custom_call.1} parent=1 // pred_check
      %p165 = pneg %p40
    $region23: #{tpu_custom_call.1} parent=1 // pred_check_branch
      %167 = sbr.rel (%p165) target = $region25
    $region24: #{tpu_custom_call.1} parent=1 // pred_region
      %v168 = vld [vmem:[#allocation2] sm:$0xff]
      %v169 = vld [vmem:[#allocation2 + $0x8] sm:$0xff]
      %v170 = vld [vmem:[#allocation2 + $0x10] sm:$0xff]
      %v171 = vld [vmem:[#allocation2 + $0x18] sm:$0xff]
      %172 = vst [vmem:[#allocation8] sm:$0xff] %v168
      %173 = vst [vmem:[#allocation8 + $0x8] sm:$0xff] %v169
      %174 = vst [vmem:[#allocation8 + $0x10] sm:$0xff] %v170
      %175 = vst [vmem:[#allocation8 + $0x18] sm:$0xff] %v171
    $region25: #{tpu_custom_call.1} parent=1 // pred_fallthru
      _
    // Predicated region
    $region26: #{tpu_custom_call.1} parent=1 // pred_check
      _
    $region27: #{tpu_custom_call.1} parent=1 // pred_check_branch
      %177 = sbr.rel (0) target = $region29
    $region28: #{tpu_custom_call.1} parent=1 // pred_region
      %s179 = ssub.s32 512, 512
      %180 = vsyncadd [#allocation5], %s179
      %s181 = sshll.u32 [#allocation8], 4
      %s182 = int_to_ptr.vmem [resolvable:$true] %s181
      %187 = dma.vmem_to_hbm [thread:$0]  %s182, 512, %s2, [#allocation5], 128, 128, 8
    $region29: #{tpu_custom_call.1} parent=1 // pred_fallthru
      _
    // Predicated region
    $region30: #{tpu_custom_call.1} parent=1 // pred_check
      _
    $region31: #{tpu_custom_call.1} parent=1 // pred_check_branch
      %189 = sbr.rel (0) target = $region33
    $region32: #{tpu_custom_call.1} parent=1 // pred_region
      %190 = dma.done [#allocation5], 512
    $region33: #{tpu_custom_call.1} parent=1 // pred_fallthru
      _
    %191 = vsyncpa [#allocation4], 1
    %192 = vsyncpa [#allocation7], 1
    %193 = vsyncpa [#allocation5], 1

</llo_original>
